<compile_context>
chip_gen: v6e
topology: v6e:2x2x1
jax: 0.10.0
libtpu: 0.0.40
codegen_flags: <defaults>
</compile_context>

<pallas_src>
import functools

import numpy as np

import jax
import jax.numpy as jnp
from jax import lax
from jax.experimental import pallas as pl
from jax.experimental.pallas import tpu as pltpu


def _round_up(x, m):
    return (x + m - 1) // m * m


def _pair_tile_kernel(tbl_ref, emb_r_ref, emb_ct_ref, lab_r_ref, lab_c_ref,
                      sq_r_ref, sq_c_ref, o_ref, *, margin, n_real, tile):
    """One upper-triangular (tile, tile) pair tile -> scalar partial loss sum."""
    t = pl.program_id(0)
    i = tbl_ref[t, 0]          # row tile index (SMEM scalar)
    j = tbl_ref[t, 1]          # col tile index (SMEM scalar)

    # Gram tile on the MXU: (tile, D) x (D, tile), plain NN contraction.
    g = jnp.dot(emb_r_ref[...], emb_ct_ref[...],
                preferred_element_type=jnp.float32)                 # (tile, tile)

    # ||a - b||^2 = ||a||^2 + ||b||^2 - 2<a,b>, clamped >= 0 so positive pairs
    # cannot go negative through cancellation and sqrt is well-defined.
    d2 = jnp.maximum(sq_r_ref[...] + sq_c_ref[...] - 2.0 * g, 0.0)  # (tile, tile)
    dist = jnp.sqrt(d2)
    hinge = jnp.maximum(margin - dist, 0.0)
    same = lab_r_ref[...] == lab_c_ref[...]
    # Fused epilogue: positive pair -> d2, negative pair -> relu(margin - d)^2.
    elem = jnp.where(same, d2, hinge * hinge)

    # Interior tiles (i < j and the whole col tile inside the real batch; with
    # square tiles this also implies every row is valid and row < col for all
    # elements) need no per-element masking at all.
    interior = jnp.logical_and(i < j, (j + 1) * tile <= n_real)

    @pl.when(interior)
    def _interior():
        o_ref[...] = jnp.full(o_ref.shape, jnp.sum(elem), dtype=o_ref.dtype)

    @pl.when(jnp.logical_not(interior))
    def _boundary():
        row_g = i * tile + lax.broadcasted_iota(jnp.int32, (tile, tile), 0)
        col_g = j * tile + lax.broadcasted_iota(jnp.int32, (tile, tile), 1)
        # row_g < col_g together with col_g < n_real implies row_g < n_real,
        # so two compares suffice.
        valid = (row_g < col_g) & (col_g < n_real)
        o_ref[...] = jnp.full(o_ref.shape,
                              jnp.sum(jnp.where(valid, elem, 0.0)),
                              dtype=o_ref.dtype)


def _pick_tile(n_pad128, d, itemsize):
    """Largest square pair tile whose double-buffered operands fit a budget
    that is safe on every TPU generation (v5e 16 MiB scoped default is raised
    explicitly; v7x physical VMEM is only 64 MiB)."""
    budget = 24 * 1024 * 1024
    for t in (512, 256, 128):
        if t > n_pad128 and t != 128:
            continue
        emb_bytes = 2 * 2 * t * d * itemsize          # row + col blocks, x2 buffers
        strip_bytes = 2 * 2 * t * 128 * 4 + 2 * 2 * 8 * t * 4   # label/sq strips
        if emb_bytes + strip_bytes <= budget:
            return t
    return 128


def online_contrastive_loss(embeddings, target, margin, *, tile=None,
                            gram_dtype=None):
    """embeddings: (N, D) float (f32 or bf16), target: (N,) int labels.

    `gram_dtype=jnp.bfloat16` is recommended on v5e for f32 callers (multi-x
    MXU win, half the embedding DMA); the default keeps the input dtype so
    f32 numerics match the reference exactly.
    """
    n, d = embeddings.shape
    gram_dtype = embeddings.dtype if gram_dtype is None else jnp.dtype(gram_dtype)
    itemsize = jnp.dtype(gram_dtype).itemsize

    if tile is None:
        tile = _pick_tile(_round_up(max(n, 1), 128), d, itemsize)
    n_pad = _round_up(max(n, 1), tile)
    ni = n_pad // tile

    # Row-major list of the ni*(ni+1)/2 upper-triangular (i, j) tile pairs.
    # Consecutive grid steps share the row block, so its DMA is reused.
    iu = np.triu_indices(ni)
    tile_table = jnp.asarray(np.stack(iu, axis=1), dtype=jnp.int32)   # (T, 2)
    num_tiles = int(tile_table.shape[0])

    emb_pad = jnp.pad(embeddings, ((0, n_pad - n), (0, 0)))

    # O(N*D) squared norms once, in f32 from the original-precision embeddings.
    ef = emb_pad.astype(jnp.float32)
    sq = jnp.sum(ef * ef, axis=-1)
    sq_row = sq.reshape(n_pad, 1)
    sq_col = sq.reshape(1, n_pad)

    emb_rows = emb_pad.astype(gram_dtype)          # (N_pad, D) row blocks
    emb_cols_t = emb_rows.T                        # (D, N_pad) pre-transposed cols

    lab_pad = jnp.pad(target.astype(jnp.int32), (0, n_pad - n),
                      constant_values=-1)
    lab_row = lab_pad.reshape(n_pad, 1)
    lab_col = lab_pad.reshape(1, n_pad)

    # Explicit scoped-VMEM limit sized from the double-buffered operands.
    emb_bytes = 2 * 2 * tile * d * itemsize
    strip_bytes = 2 * 2 * tile * 128 * 4 + 2 * 2 * 8 * tile * 4
    out_bytes = 2 * 8 * 128 * 4
    vmem_limit = int(min(max(emb_bytes + strip_bytes + out_bytes + (4 << 20),
                             32 << 20), 60 << 20))

    kernel = functools.partial(_pair_tile_kernel, margin=float(margin),
                               n_real=n, tile=tile)

    partials = pl.pallas_call(
        kernel,
        out_shape=jax.ShapeDtypeStruct((num_tiles, 8, 128), jnp.float32),
        grid_spec=pltpu.PrefetchScalarGridSpec(
            num_scalar_prefetch=1,
            grid=(num_tiles,),
            in_specs=[
                pl.BlockSpec((tile, d), lambda t, tab: (tab[t, 0], 0)),  # row emb
                pl.BlockSpec((d, tile), lambda t, tab: (0, tab[t, 1])),  # col emb^T
                pl.BlockSpec((tile, 1), lambda t, tab: (tab[t, 0], 0)),  # row labels
                pl.BlockSpec((1, tile), lambda t, tab: (0, tab[t, 1])),  # col labels
                pl.BlockSpec((tile, 1), lambda t, tab: (tab[t, 0], 0)),  # row sq-norms
                pl.BlockSpec((1, tile), lambda t, tab: (0, tab[t, 1])),  # col sq-norms
            ],
            out_specs=pl.BlockSpec((1, 8, 128), lambda t, tab: (t, 0, 0)),
        ),
        compiler_params=pltpu.CompilerParams(
            dimension_semantics=("parallel",),
            vmem_limit_bytes=vmem_limit),
    )(tile_table, emb_rows, emb_cols_t, lab_row, lab_col, sq_row, sq_col)

    # Positive and negative pairs partition the strict upper triangle.
    # NOTE: N == 1 gives count 0 and a NaN mean, matching torch.mean of an
    # empty tensor; callers should guard that case.
    count = n * (n - 1) / 2.0
    return jnp.sum(partials[:, 0, 0]) / jnp.float32(count)


def _all_pairs_selector(target):
    n = target.shape[0]
    same = target[:, None] == target[None, :]
    upper = jnp.triu(jnp.ones((n, n), dtype=bool), k=1)
    return (same & upper), ((~same) & upper)


def _reference_loss(embeddings, target, margin):
    """Pure-JAX reference mirroring the PyTorch forward."""
    pos_mask, neg_mask = _all_pairs_selector(target)
    e = embeddings.astype(jnp.float32)
    diff = e[:, None, :] - e[None, :, :]
    d2 = jnp.sum(diff * diff, axis=-1)
    pos_losses = d2
    neg_losses = jnp.maximum(margin - jnp.sqrt(jnp.maximum(d2, 0.0)), 0.0) ** 2
    total = (jnp.sum(jnp.where(pos_mask, pos_losses, 0.0))
             + jnp.sum(jnp.where(neg_mask, neg_losses, 0.0)))
    count = jnp.sum(pos_mask) + jnp.sum(neg_mask)
    return total / count


if __name__ == "__main__":
    key = jax.random.PRNGKey(0)
    k_emb, k_lab = jax.random.split(key)

    N, D = 8, 32
    margin = 1.0
    embeddings = jax.random.normal(k_emb, (N, D), dtype=jnp.float32)
    target = jax.random.randint(k_lab, (N,), 0, 3, dtype=jnp.int32)

    loss = online_contrastive_loss(embeddings, target, margin)
    loss = jax.block_until_ready(loss)

    ref = _reference_loss(embeddings, target, margin)
    assert jnp.allclose(loss, ref, rtol=1e-5, atol=1e-5), (loss, ref)

    print("KERNEL_OK")
</pallas_src>

<mosaic_0001>
module attributes {stable_mosaic.version = 11 : i64} {
  func.func @_pair_tile_kernel(%arg0: i32, %arg1: memref<1x2xi32, #tpu.memory_space<smem>>, %arg2: memref<128x32xf32, #tpu.memory_space<vmem>>, %arg3: memref<32x128xf32, #tpu.memory_space<vmem>>, %arg4: memref<128x1xi32, #tpu.memory_space<vmem>>, %arg5: memref<1x128xi32, #tpu.memory_space<vmem>>, %arg6: memref<128x1xf32, #tpu.memory_space<vmem>>, %arg7: memref<1x128xf32, #tpu.memory_space<vmem>>, %arg8: memref<1x8x128xf32, #tpu.memory_space<vmem>>) attributes {dimension_semantics = [#tpu.dimension_semantics<parallel>], iteration_bounds = array<i64: 1>, scalar_prefetch = 1 : i64, scratch_operands = 0 : i64, tpu.core_type = #tpu.core_type<tc>, window_params = [{transform_indices = @transform_0, window_bounds = array<i64: 128, 32>}, {transform_indices = @transform_1, window_bounds = array<i64: 32, 128>}, {transform_indices = @transform_2, window_bounds = array<i64: 128, 1>}, {transform_indices = @transform_3, window_bounds = array<i64: 1, 128>}, {transform_indices = @transform_4, window_bounds = array<i64: 128, 1>}, {transform_indices = @transform_5, window_bounds = array<i64: 1, 128>}, {transform_indices = @transform_6, window_bounds = array<i64: 1, 8, 128>}]} {
    %0 = arith.index_cast %arg0 : i32 to index
    %c0 = arith.constant 0 : index
    %1 = memref.load %arg1[%0, %c0] : memref<1x2xi32, #tpu.memory_space<smem>>
    %2 = arith.index_cast %arg0 : i32 to index
    %c1 = arith.constant 1 : index
    %3 = memref.load %arg1[%2, %c1] : memref<1x2xi32, #tpu.memory_space<smem>>
    %c0_0 = arith.constant 0 : index
    %c0_1 = arith.constant 0 : index
    %4 = vector.load %arg2[%c0_0, %c0_1] : memref<128x32xf32, #tpu.memory_space<vmem>>, vector<128x32xf32>
    %c0_2 = arith.constant 0 : index
    %c0_3 = arith.constant 0 : index
    %5 = vector.load %arg3[%c0_2, %c0_3] : memref<32x128xf32, #tpu.memory_space<vmem>>, vector<32x128xf32>
    %cst = arith.constant dense<0.000000e+00> : vector<128x128xf32>
    %6 = tpu.matmul %4, %5, %cst {dimension_numbers = #tpu.dot_dimension_numbers<[1], [0], [0], [1], [0, 0, 1, 1], [], []>} : vector<128x32xf32>, vector<32x128xf32>, vector<128x128xf32> -> vector<128x128xf32>
    %c0_4 = arith.constant 0 : index
    %c0_5 = arith.constant 0 : index
    %7 = vector.load %arg6[%c0_4, %c0_5] : memref<128x1xf32, #tpu.memory_space<vmem>>, vector<128x1xf32>
    %c0_6 = arith.constant 0 : index
    %c0_7 = arith.constant 0 : index
    %8 = vector.load %arg7[%c0_6, %c0_7] : memref<1x128xf32, #tpu.memory_space<vmem>>, vector<1x128xf32>
    %9 = vector.broadcast %7 : vector<128x1xf32> to vector<128x128xf32>
    %10 = vector.broadcast %8 : vector<1x128xf32> to vector<128x128xf32>
    %11 = arith.addf %9, %10 : vector<128x128xf32>
    %cst_8 = arith.constant 2.000000e+00 : f32
    %12 = vector.broadcast %cst_8 : f32 to vector<128x128xf32>
    %13 = arith.mulf %12, %6 : vector<128x128xf32>
    %14 = arith.subf %11, %13 : vector<128x128xf32>
    %cst_9 = arith.constant 0.000000e+00 : f32
    %15 = vector.broadcast %cst_9 : f32 to vector<128x128xf32>
    %16 = arith.maximumf %14, %15 : vector<128x128xf32>
    %17 = math.sqrt %16 : vector<128x128xf32>
    %cst_10 = arith.constant 1.000000e+00 : f32
    %18 = vector.broadcast %cst_10 : f32 to vector<128x128xf32>
    %19 = arith.subf %18, %17 : vector<128x128xf32>
    %cst_11 = arith.constant 0.000000e+00 : f32
    %20 = vector.broadcast %cst_11 : f32 to vector<128x128xf32>
    %21 = arith.maximumf %19, %20 : vector<128x128xf32>
    %c0_12 = arith.constant 0 : index
    %c0_13 = arith.constant 0 : index
    %22 = vector.load %arg4[%c0_12, %c0_13] : memref<128x1xi32, #tpu.memory_space<vmem>>, vector<128x1xi32>
    %c0_14 = arith.constant 0 : index
    %c0_15 = arith.constant 0 : index
    %23 = vector.load %arg5[%c0_14, %c0_15] : memref<1x128xi32, #tpu.memory_space<vmem>>, vector<1x128xi32>
    %24 = vector.broadcast %22 : vector<128x1xi32> to vector<128x128xi32>
    %25 = vector.broadcast %23 : vector<1x128xi32> to vector<128x128xi32>
    %26 = arith.cmpi eq, %24, %25 : vector<128x128xi32>
    %27 = arith.mulf %21, %21 : vector<128x128xf32>
    %28 = arith.select %26, %16, %27 : vector<128x128xi1>, vector<128x128xf32>
    %29 = arith.cmpi slt, %1, %3 : i32
    %c1_i32 = arith.constant 1 : i32
    %30 = arith.addi %3, %c1_i32 : i32
    %c128_i32 = arith.constant 128 : i32
    %31 = arith.muli %30, %c128_i32 : i32
    %c8_i32 = arith.constant 8 : i32
    %32 = arith.cmpi sle, %31, %c8_i32 : i32
    %33 = arith.andi %29, %32 : i1
    %34 = arith.extui %33 : i1 to i32
    %c0_i32 = arith.constant 0 : i32
    %35 = arith.cmpi ne, %34, %c0_i32 : i32
    scf.if %35 {
      %39 = vector.shape_cast %28 : vector<128x128xf32> to vector<1x128x128xf32>
      %cst_17 = arith.constant dense<0.000000e+00> : vector<1xf32>
      %40 = vector.multi_reduction <add>, %39, %cst_17 [1, 2] : vector<1x128x128xf32> to vector<1xf32>
      %41 = vector.shape_cast %40 : vector<1xf32> to vector<1x1x1xf32>
      %42 = vector.extract %41[0, 0, 0] : f32 from vector<1x1x1xf32>
      %43 = vector.broadcast %42 : f32 to vector<1x8x128xf32>
      %c0_18 = arith.constant 0 : index
      %c0_19 = arith.constant 0 : index
      %c0_20 = arith.constant 0 : index
      %44 = vector.load %arg8[%c0_18, %c0_19, %c0_20] : memref<1x8x128xf32, #tpu.memory_space<vmem>>, vector<1x8x128xf32>
      tpu.vector_store %arg8[%c0_18, %c0_19, %c0_20], %43 {strides = array<i32>} : memref<1x8x128xf32, #tpu.memory_space<vmem>>, vector<1x8x128xf32>,
    } else {
    }
    %true = arith.constant true
    %36 = arith.xori %33, %true : i1
    %37 = arith.extui %36 : i1 to i32
    %c0_i32_16 = arith.constant 0 : i32
    %38 = arith.cmpi ne, %37, %c0_i32_16 : i32
    scf.if %38 {
      %c128_i32_17 = arith.constant 128 : i32
      %39 = arith.muli %1, %c128_i32_17 : i32
      %40 = tpu.iota {dimensions = array<i32: 0>} : vector<128x128xi32>
      %41 = vector.broadcast %39 : i32 to vector<128x128xi32>
      %42 = arith.addi %41, %40 : vector<128x128xi32>
      %c128_i32_18 = arith.constant 128 : i32
      %43 = arith.muli %3, %c128_i32_18 : i32
      %44 = tpu.iota {dimensions = array<i32: 1>} : vector<128x128xi32>
      %45 = vector.broadcast %43 : i32 to vector<128x128xi32>
      %46 = arith.addi %45, %44 : vector<128x128xi32>
      %47 = arith.cmpi slt, %42, %46 : vector<128x128xi32>
      %c8_i32_19 = arith.constant 8 : i32
      %48 = vector.broadcast %c8_i32_19 : i32 to vector<128x128xi32>
      %49 = arith.cmpi slt, %46, %48 : vector<128x128xi32>
      %50 = arith.andi %47, %49 : vector<128x128xi1>
      %cst_20 = arith.constant 0.000000e+00 : f32
      %51 = vector.broadcast %cst_20 : f32 to vector<128x128xf32>
      %52 = arith.select %50, %28, %51 : vector<128x128xi1>, vector<128x128xf32>
      %53 = vector.shape_cast %52 : vector<128x128xf32> to vector<1x128x128xf32>
      %cst_21 = arith.constant dense<0.000000e+00> : vector<1xf32>
      %54 = vector.multi_reduction <add>, %53, %cst_21 [1, 2] : vector<1x128x128xf32> to vector<1xf32>
      %55 = vector.shape_cast %54 : vector<1xf32> to vector<1x1x1xf32>
      %56 = vector.extract %55[0, 0, 0] : f32 from vector<1x1x1xf32>
      %57 = vector.broadcast %56 : f32 to vector<1x8x128xf32>
      %c0_22 = arith.constant 0 : index
      %c0_23 = arith.constant 0 : index
      %c0_24 = arith.constant 0 : index
      %58 = vector.load %arg8[%c0_22, %c0_23, %c0_24] : memref<1x8x128xf32, #tpu.memory_space<vmem>>, vector<1x8x128xf32>
      tpu.vector_store %arg8[%c0_22, %c0_23, %c0_24], %57 {strides = array<i32>} : memref<1x8x128xf32, #tpu.memory_space<vmem>>, vector<1x8x128xf32>,
    } else {
    }
    return
  }
  func.func @transform_0(%arg0: i32, %arg1: memref<1x2xi32, #tpu.memory_space<smem>>) -> (i32, i32) {
    %0 = arith.index_cast %arg0 : i32 to index
    %c0 = arith.constant 0 : index
    %1 = memref.load %arg1[%0, %c0] : memref<1x2xi32, #tpu.memory_space<smem>>
    %c0_i32 = arith.constant 0 : i32
    %c0_i32_0 = arith.constant 0 : i32
    return %1, %c0_i32 : i32, i32
  }
  func.func @transform_1(%arg0: i32, %arg1: memref<1x2xi32, #tpu.memory_space<smem>>) -> (i32, i32) {
    %0 = arith.index_cast %arg0 : i32 to index
    %c1 = arith.constant 1 : index
    %1 = memref.load %arg1[%0, %c1] : memref<1x2xi32, #tpu.memory_space<smem>>
    %c0_i32 = arith.constant 0 : i32
    %c0_i32_0 = arith.constant 0 : i32
    return %c0_i32, %1 : i32, i32
  }
  func.func @transform_2(%arg0: i32, %arg1: memref<1x2xi32, #tpu.memory_space<smem>>) -> (i32, i32) {
    %0 = arith.index_cast %arg0 : i32 to index
    %c0 = arith.constant 0 : index
    %1 = memref.load %arg1[%0, %c0] : memref<1x2xi32, #tpu.memory_space<smem>>
    %c0_i32 = arith.constant 0 : i32
    %c0_i32_0 = arith.constant 0 : i32
    return %1, %c0_i32 : i32, i32
  }
  func.func @transform_3(%arg0: i32, %arg1: memref<1x2xi32, #tpu.memory_space<smem>>) -> (i32, i32) {
    %0 = arith.index_cast %arg0 : i32 to index
    %c1 = arith.constant 1 : index
    %1 = memref.load %arg1[%0, %c1] : memref<1x2xi32, #tpu.memory_space<smem>>
    %c0_i32 = arith.constant 0 : i32
    %c0_i32_0 = arith.constant 0 : i32
    return %c0_i32, %1 : i32, i32
  }
  func.func @transform_4(%arg0: i32, %arg1: memref<1x2xi32, #tpu.memory_space<smem>>) -> (i32, i32) {
    %0 = arith.index_cast %arg0 : i32 to index
    %c0 = arith.constant 0 : index
    %1 = memref.load %arg1[%0, %c0] : memref<1x2xi32, #tpu.memory_space<smem>>
    %c0_i32 = arith.constant 0 : i32
    %c0_i32_0 = arith.constant 0 : i32
    return %1, %c0_i32 : i32, i32
  }
  func.func @transform_5(%arg0: i32, %arg1: memref<1x2xi32, #tpu.memory_space<smem>>) -> (i32, i32) {
    %0 = arith.index_cast %arg0 : i32 to index
    %c1 = arith.constant 1 : index
    %1 = memref.load %arg1[%0, %c1] : memref<1x2xi32, #tpu.memory_space<smem>>
    %c0_i32 = arith.constant 0 : i32
    %c0_i32_0 = arith.constant 0 : i32
    return %c0_i32, %1 : i32, i32
  }
  func.func @transform_6(%arg0: i32, %arg1: memref<1x2xi32, #tpu.memory_space<smem>>) -> (i32, i32, i32) {
    %c0_i32 = arith.constant 0 : i32
    %c0_i32_0 = arith.constant 0 : i32
    %c0_i32_1 = arith.constant 0 : i32
    return %arg0, %c0_i32, %c0_i32_0 : i32, i32, i32
  }
}

</mosaic_0001>

<llo_original>
// kernel: tpu_custom_call.1
$region0: #{tpu_custom_call.1}
  #allocation0 [shape = 'u32[]', space=smem, size = 0x4, offset = 0x4, fixed_abs, tag = 'smem constant byte address 0x4 - core index']
  #allocation1 [shape = 'u32[144,128]{1,0:T(1,128)}', space=vmem, size = 0x12000, scoped, tag = 'internal scratch']
  #allocation2 [shape = 's32[1]{0}', space=sflag, size = 0x4, scoped, tag = 'scoped memory for tpu_custom_call.1']
  #allocation3 [shape = 'u8[512]{0}', space=smem, size = 0x200, scoped, tag = 'prefetched SMEM operand 0']
  %s0 = inlined_call_operand.vmem [shape: s32[1,2], index: 0, kind: input, shape index: {}]
  %s1 = inlined_call_operand.vmem [shape: f32[128,32], index: 1, kind: input, shape index: {}]
  %s2 = inlined_call_operand.vmem [shape: f32[32,128], index: 2, kind: input, shape index: {}]
  %s3 = inlined_call_operand.vmem [shape: s32[128,1], index: 3, kind: input, shape index: {}]
  %s4 = inlined_call_operand.vmem [shape: s32[1,128], index: 4, kind: input, shape index: {}]
  %s5 = inlined_call_operand.vmem [shape: f32[128,1], index: 5, kind: input, shape index: {}]
  %s6 = inlined_call_operand.vmem [shape: f32[1,128], index: 6, kind: input, shape index: {}]
  %s7 = inlined_call_operand.hbm [shape: f32[1,8,128], index: 7, kind: output, shape index: {}]
  %s8 = sld [smem:[#allocation0]]
  $region42: #{tpu_custom_call.1} parent=0
    _
  %s10 = ssub.s32 1, %s8
  %s11 = scalar_select 0, %s10, %s8
  %s12 = sshll.u32 %s0, 4
  %s13 = int_to_ptr.vmem [resolvable:$true] %s12
  %15 = dma.vmem_to_smem %s13, 16, [#allocation3], [#allocation2]
  %16 = dma.done [#allocation2], 16
  %17 = sfence
  $region1: #{tpu_custom_call.1} parent=0
    #allocation4 [shape = 'u8[4096]{0}', space=vmem, size = 0x1000, scoped, tag = 'output window, operand 0, single buffered']
    #allocation5 [shape = 's32[1]{0}', space=sflag, size = 0x4, scoped, tag = 'scoped memory for tpu_custom_call.1']
    %18 = vsyncpa [#allocation5], 0
    // Predicated region
    $region2: #{tpu_custom_call.1} parent=1 // pred_check
      _
    $region3: #{tpu_custom_call.1} parent=1 // pred_check_branch
      %20 = sbr.rel (0) target = $region5
    $region4: #{tpu_custom_call.1} parent=1 // pred_region
      %s21 = smul.u32 0, 128
      %s22 = sld [smem:[#allocation3 + %s21]]
      %s23 = smul.u32 16, %s22
      %p24 = scmp.lt.s32.totalorder %s23, 15
      %s25 = scalar_select %p24, %s23, 15
      %s26 = smul.addr %s25, 8
      %s27 = scalar_lea.vmem %s1, %s26
      %s28 = smul.u32 0, 128
      %s29 = sld [smem:[#allocation3 + %s28]]
      %s30 = smul.u32 16, %s29
    $region5: #{tpu_custom_call.1} parent=1 // pred_fallthru
      _
    // Predicated region
    $region6: #{tpu_custom_call.1} parent=1 // pred_check
      _
    $region7: #{tpu_custom_call.1} parent=1 // pred_check_branch
      %32 = sbr.rel (0) target = $region9
    $region8: #{tpu_custom_call.1} parent=1 // pred_region
      %s33 = smul.u32 0, 128
      %s34 = sadd.s32 %s33, 1
      %s35 = sld [smem:[#allocation3 + %s34]]
      %p36 = scmp.lt.s32.totalorder %s35, 0
      %s37 = scalar_select %p36, %s35, 0
      %s38 = smul.addr %s37, 8
      %s39 = scalar_lea.vmem %s2, %s38
      %s40 = smul.u32 0, 128
      %s41 = sadd.s32 %s40, 1
      %s42 = sld [smem:[#allocation3 + %s41]]
    $region9: #{tpu_custom_call.1} parent=1 // pred_fallthru
      _
    // Predicated region
    $region10: #{tpu_custom_call.1} parent=1 // pred_check
      _
    $region11: #{tpu_custom_call.1} parent=1 // pred_check_branch
      %44 = sbr.rel (0) target = $region13
    $region12: #{tpu_custom_call.1} parent=1 // pred_region
      %s45 = smul.u32 0, 128
      %s46 = sld [smem:[#allocation3 + %s45]]
      %s47 = smul.u32 16, %s46
      %p48 = scmp.lt.s32.totalorder %s47, 15
      %s49 = scalar_select %p48, %s47, 15
      %s50 = smul.addr %s49, 8
      %s51 = scalar_lea.vmem %s3, %s50
      %s52 = smul.u32 0, 128
      %s53 = sld [smem:[#allocation3 + %s52]]
      %s54 = smul.u32 16, %s53
    $region13: #{tpu_custom_call.1} parent=1 // pred_fallthru
      _
    // Predicated region
    $region14: #{tpu_custom_call.1} parent=1 // pred_check
      _
    $region15: #{tpu_custom_call.1} parent=1 // pred_check_branch
      %56 = sbr.rel (0) target = $region17
    $region16: #{tpu_custom_call.1} parent=1 // pred_region
      %s57 = smul.u32 0, 128
      %s58 = sadd.s32 %s57, 1
      %s59 = sld [smem:[#allocation3 + %s58]]
      %p60 = scmp.lt.s32.totalorder %s59, 0
      %s61 = scalar_select %p60, %s59, 0
      %s62 = scalar_lea.vmem %s4, %s61
      %s63 = smul.u32 0, 128
      %s64 = sadd.s32 %s63, 1
      %s65 = sld [smem:[#allocation3 + %s64]]
    $region17: #{tpu_custom_call.1} parent=1 // pred_fallthru
      _
    // Predicated region
    $region18: #{tpu_custom_call.1} parent=1 // pred_check
      _
    $region19: #{tpu_custom_call.1} parent=1 // pred_check_branch
      %67 = sbr.rel (0) target = $region21
    $region20: #{tpu_custom_call.1} parent=1 // pred_region
      %s68 = smul.u32 0, 128
      %s69 = sld [smem:[#allocation3 + %s68]]
      %s70 = smul.u32 16, %s69
      %p71 = scmp.lt.s32.totalorder %s70, 15
      %s72 = scalar_select %p71, %s70, 15
      %s73 = smul.addr %s72, 8
      %s74 = scalar_lea.vmem %s5, %s73
      %s75 = smul.u32 0, 128
      %s76 = sld [smem:[#allocation3 + %s75]]
      %s77 = smul.u32 16, %s76
    $region21: #{tpu_custom_call.1} parent=1 // pred_fallthru
      _
    // Predicated region
    $region22: #{tpu_custom_call.1} parent=1 // pred_check
      _
    $region23: #{tpu_custom_call.1} parent=1 // pred_check_branch
      %79 = sbr.rel (0) target = $region25
    $region24: #{tpu_custom_call.1} parent=1 // pred_region
      %s80 = smul.u32 0, 128
      %s81 = sadd.s32 %s80, 1
      %s82 = sld [smem:[#allocation3 + %s81]]
      %p83 = scmp.lt.s32.totalorder %s82, 0
      %s84 = scalar_select %p83, %s82, 0
      %s85 = scalar_lea.vmem %s6, %s84
      %s86 = smul.u32 0, 128
      %s87 = sadd.s32 %s86, 1
      %s88 = sld [smem:[#allocation3 + %s87]]
    $region25: #{tpu_custom_call.1} parent=1 // pred_fallthru
      _
    %s89 = smul.u32 0, 128
    %s90 = sld [smem:[#allocation3 + %s89]]
    %s91 = smul.u32 16, %s90
    %p92 = scmp.lt.s32.totalorder %s91, 15
    %s93 = scalar_select %p92, %s91, 15
    %s94 = smul.addr %s93, 8
    %s95 = scalar_lea.vmem %s1, %s94
    %s96 = smul.u32 0, 128
    %s97 = sadd.s32 %s96, 1
    %s98 = sld [smem:[#allocation3 + %s97]]
    %p99 = scmp.lt.s32.totalorder %s98, 0
    %s100 = scalar_select %p99, %s98, 0
    %s101 = smul.addr %s100, 8
    %s102 = scalar_lea.vmem %s2, %s101
    %s103 = smul.u32 0, 128
    %s104 = sld [smem:[#allocation3 + %s103]]
    %s105 = smul.u32 16, %s104
    %p106 = scmp.lt.s32.totalorder %s105, 15
    %s107 = scalar_select %p106, %s105, 15
    %s108 = smul.addr %s107, 8
    %s109 = scalar_lea.vmem %s3, %s108
    %s110 = smul.u32 0, 128
    %s111 = sadd.s32 %s110, 1
    %s112 = sld [smem:[#allocation3 + %s111]]
    %p113 = scmp.lt.s32.totalorder %s112, 0
    %s114 = scalar_select %p113, %s112, 0
    %s115 = scalar_lea.vmem %s4, %s114
    %s116 = smul.u32 0, 128
    %s117 = sld [smem:[#allocation3 + %s116]]
    %s118 = smul.u32 16, %s117
    %p119 = scmp.lt.s32.totalorder %s118, 15
    %s120 = scalar_select %p119, %s118, 15
    %s121 = smul.addr %s120, 8
    %s122 = scalar_lea.vmem %s5, %s121
    %s123 = smul.u32 0, 128
    %s124 = sadd.s32 %s123, 1
    %s125 = sld [smem:[#allocation3 + %s124]]
    %p126 = scmp.lt.s32.totalorder %s125, 0
    %s127 = scalar_select %p126, %s125, 0
    %s128 = scalar_lea.vmem %s6, %s127
    %s129 = smul.u32 0, 128
    %s130 = sld [smem:[#allocation3 + %s129]]
    %s131 = smul.u32 16, %s130
    %p132 = scmp.lt.s32.totalorder %s131, 15
    %s133 = scalar_select %p132, %s131, 15
    %s134 = smul.addr %s133, 8
    %s135 = scalar_lea.vmem %s1, %s134
    %s136 = smul.u32 0, 128
    %s137 = sld [smem:[#allocation3 + %s136]]
    %s138 = smul.u32 16, %s137
    %s139 = smul.u32 0, 128
    %s140 = sadd.s32 %s139, 1
    %s141 = sld [smem:[#allocation3 + %s140]]
    %p142 = scmp.lt.s32.totalorder %s141, 0
    %s143 = scalar_select %p142, %s141, 0
    %s144 = smul.addr %s143, 8
    %s145 = scalar_lea.vmem %s2, %s144
    %s146 = smul.u32 0, 128
    %s147 = sadd.s32 %s146, 1
    %s148 = sld [smem:[#allocation3 + %s147]]
    %s149 = smul.u32 0, 128
    %s150 = sld [smem:[#allocation3 + %s149]]
    %s151 = smul.u32 16, %s150
    %p152 = scmp.lt.s32.totalorder %s151, 15
    %s153 = scalar_select %p152, %s151, 15
    %s154 = smul.addr %s153, 8
    %s155 = scalar_lea.vmem %s3, %s154
    %s156 = smul.u32 0, 128
    %s157 = sld [smem:[#allocation3 + %s156]]
    %s158 = smul.u32 16, %s157
    %s159 = smul.u32 0, 128
    %s160 = sadd.s32 %s159, 1
    %s161 = sld [smem:[#allocation3 + %s160]]
    %p162 = scmp.lt.s32.totalorder %s161, 0
    %s163 = scalar_select %p162, %s161, 0
    %s164 = scalar_lea.vmem %s4, %s163
    %s165 = smul.u32 0, 128
    %s166 = sadd.s32 %s165, 1
    %s167 = sld [smem:[#allocation3 + %s166]]
    %s168 = smul.u32 0, 128
    %s169 = sld [smem:[#allocation3 + %s168]]
    %s170 = smul.u32 16, %s169
    %p171 = scmp.lt.s32.totalorder %s170, 15
    %s172 = scalar_select %p171, %s170, 15
    %s173 = smul.addr %s172, 8
    %s174 = scalar_lea.vmem %s5, %s173
    %s175 = smul.u32 0, 128
    %s176 = sld [smem:[#allocation3 + %s175]]
    %s177 = smul.u32 16, %s176
    %s178 = smul.u32 0, 128
    %s179 = sadd.s32 %s178, 1
    %s180 = sld [smem:[#allocation3 + %s179]]
    %p181 = scmp.lt.s32.totalorder %s180, 0
    %s182 = scalar_select %p181, %s180, 0
    %s183 = scalar_lea.vmem %s6, %s182
    %s184 = smul.u32 0, 128
    %s185 = sadd.s32 %s184, 1
    %s186 = sld [smem:[#allocation3 + %s185]]
    %s187 = smul.u32 0, 128
    %s188 = sld [smem:[#allocation3 + %s187]]
    %s189 = sadd.s32 %s187, 1
    %s190 = sld [smem:[#allocation3 + %s189]]
    %v191 = vld [vmem:[%s135] sm:$0xff]
    %v192 = vld [vmem:[%s135 + $0x8] sm:$0xff]
    %v193 = vld [vmem:[%s135 + $0x10] sm:$0xff]
    %v194 = vld [vmem:[%s135 + $0x18] sm:$0xff]
    %v195 = vld [vmem:[%s135 + $0x20] sm:$0xff]
    %v196 = vld [vmem:[%s135 + $0x28] sm:$0xff]
    %v197 = vld [vmem:[%s135 + $0x30] sm:$0xff]
    %v198 = vld [vmem:[%s135 + $0x38] sm:$0xff]
    %v199 = vld [vmem:[%s135 + $0x40] sm:$0xff]
    %v200 = vld [vmem:[%s135 + $0x48] sm:$0xff]
    %v201 = vld [vmem:[%s135 + $0x50] sm:$0xff]
    %v202 = vld [vmem:[%s135 + $0x58] sm:$0xff]
    %v203 = vld [vmem:[%s135 + $0x60] sm:$0xff]
    %v204 = vld [vmem:[%s135 + $0x68] sm:$0xff]
    %v205 = vld [vmem:[%s135 + $0x70] sm:$0xff]
    %v206 = vld [vmem:[%s135 + $0x78] sm:$0xff]
    %v207 = vld [vmem:[%s145] sm:$0xff]
    %v208 = vld [vmem:[%s145 + $0x8] sm:$0xff]
    %v209 = vld [vmem:[%s145 + $0x10] sm:$0xff]
    %v210 = vld [vmem:[%s145 + $0x18] sm:$0xff]
    %vm211 = vcmask 261120
    %v213 = vsel %vm211, %v191, 0
    %v216 = vsel %vm211, %v192, 0
    %v219 = vsel %vm211, %v193, 0
    %v222 = vsel %vm211, %v194, 0
    %v225 = vsel %vm211, %v195, 0
    %v228 = vsel %vm211, %v196, 0
    %v231 = vsel %vm211, %v197, 0
    %v234 = vsel %vm211, %v198, 0
    %v237 = vsel %vm211, %v199, 0
    %v240 = vsel %vm211, %v200, 0
    %v243 = vsel %vm211, %v201, 0
    %v246 = vsel %vm211, %v202, 0
    %v249 = vsel %vm211, %v203, 0
    %v252 = vsel %vm211, %v204, 0
    %v255 = vsel %vm211, %v205, 0
    %v258 = vsel %vm211, %v206, 0
    %260 = vmatprep.subr.mxu0 0.0
    %261 = vmatpush1.msra.mxu0 0.0
    %262 = vmatprep.subr.mxu0 0.0
    %263 = vmatpush1.msra.mxu0 0.0
    %264 = vmatprep.subr.mxu0 0.0
    %265 = vmatpush1.msra.mxu0 0.0
    %266 = vmatprep.subr.mxu0 0.0
    %267 = vmatpush1.msra.mxu0 0.0
    %268 = vmatprep.subr.mxu0 0.0
    %269 = vmatpush1.msra.mxu0 0.0
    %270 = vmatprep.subr.mxu0 0.0
    %271 = vmatpush1.msra.mxu0 0.0
    %272 = vmatprep.subr.mxu0 0.0
    %273 = vmatpush1.msra.mxu0 0.0
    %274 = vmatprep.subr.mxu0 0.0
    %275 = vmatpush1.msra.mxu0 0.0
    %276 = vmatprep.subr.mxu0 0.0
    %277 = vmatpush1.msra.mxu0 0.0
    %278 = vmatprep.subr.mxu0 0.0
    %279 = vmatpush1.msra.mxu0 0.0
    %280 = vmatprep.subr.mxu0 0.0
    %281 = vmatpush1.msra.mxu0 0.0
    %282 = vmatprep.subr.mxu0 0.0
    %283 = vmatpush1.msra.mxu0 0.0
    %284 = vmatprep.subr.mxu0 0.0
    %285 = vmatpush1.msra.mxu0 %v210
    %286 = vmatprep.subr.mxu0 0.0
    %287 = vmatpush1.msra.mxu0 %v209
    %288 = vmatprep.subr.mxu0 0.0
    %289 = vmatpush1.msra.mxu0 %v208
    %290 = vmatprep.subr.mxu0 0.0
    %291 = vmatpush1.msra.mxu0 %v207
    %292 = vmatprep.subr.mxu0 0.0
    %293 = vmatpush2.msra.mxu0 0.0
    %294 = vmatprep.subr.mxu0 0.0
    %295 = vmatpush2.msra.mxu0 0.0
    %296 = vmatprep.subr.mxu0 0.0
    %297 = vmatpush2.msra.mxu0 0.0
    %298 = vmatprep.subr.mxu0 0.0
    %299 = vmatpush2.msra.mxu0 0.0
    %300 = vmatprep.subr.mxu0 0.0
    %301 = vmatpush2.msra.mxu0 0.0
    %302 = vmatprep.subr.mxu0 0.0
    %303 = vmatpush2.msra.mxu0 0.0
    %304 = vmatprep.subr.mxu0 0.0
    %305 = vmatpush2.msra.mxu0 0.0
    %306 = vmatprep.subr.mxu0 0.0
    %307 = vmatpush2.msra.mxu0 0.0
    %308 = vmatprep.subr.mxu0 0.0
    %309 = vmatpush2.msra.mxu0 0.0
    %310 = vmatprep.subr.mxu0 0.0
    %311 = vmatpush2.msra.mxu0 0.0
    %312 = vmatprep.subr.mxu0 0.0
    %313 = vmatpush2.msra.mxu0 0.0
    %314 = vmatprep.subr.mxu0 0.0
    %315 = vmatpush2.msra.mxu0 0.0
    %316 = vmatprep.subr.mxu0 0.0
    %317 = vmatpush2.msra.mxu0 0.0
    %318 = vmatprep.subr.mxu0 0.0
    %319 = vmatpush2.msra.mxu0 0.0
    %320 = vmatprep.subr.mxu0 0.0
    %321 = vmatpush2.msra.mxu0 0.0
    %322 = vmatprep.subr.mxu0 0.0
    %323 = vmatpush2.msra.mxu0 0.0
    %324 = vmatprep.mubr.f32.mxu0 0.0
    %325 = vmatmul.mubr.f32.gmra.mxu0 %v213
    %v326 = vpop.f32.mrf.mxu0
    %v327 = vadd.f32 0.0, %v326
    %v328 = vpop.f32.mrf.mxu0
    %329 = vmatprep.mubr.f32.mxu0 0.0
    %330 = vmatmul.mubr.f32.gmra.mxu0 %v216
    %v331 = vpop.f32.mrf.mxu0
    %v332 = vadd.f32 0.0, %v331
    %v333 = vpop.f32.mrf.mxu0
    %334 = vmatprep.mubr.f32.mxu0 0.0
    %335 = vmatmul.mubr.f32.gmra.mxu0 %v219
    %v336 = vpop.f32.mrf.mxu0
    %v337 = vadd.f32 0.0, %v336
    %v338 = vpop.f32.mrf.mxu0
    %339 = vmatprep.mubr.f32.mxu0 0.0
    %340 = vmatmul.mubr.f32.gmra.mxu0 %v222
    %v341 = vpop.f32.mrf.mxu0
    %v342 = vadd.f32 0.0, %v341
    %v343 = vpop.f32.mrf.mxu0
    %344 = vmatprep.mubr.f32.mxu0 0.0
    %345 = vmatmul.mubr.f32.gmra.mxu0 %v225
    %v346 = vpop.f32.mrf.mxu0
    %v347 = vadd.f32 0.0, %v346
    %v348 = vpop.f32.mrf.mxu0
    %349 = vmatprep.mubr.f32.mxu0 0.0
    %350 = vmatmul.mubr.f32.gmra.mxu0 %v228
    %v351 = vpop.f32.mrf.mxu0
    %v352 = vadd.f32 0.0, %v351
    %v353 = vpop.f32.mrf.mxu0
    %354 = vmatprep.mubr.f32.mxu0 0.0
    %355 = vmatmul.mubr.f32.gmra.mxu0 %v231
    %v356 = vpop.f32.mrf.mxu0
    %v357 = vadd.f32 0.0, %v356
    %v358 = vpop.f32.mrf.mxu0
    %359 = vmatprep.mubr.f32.mxu0 0.0
    %360 = vmatmul.mubr.f32.gmra.mxu0 %v234
    %v361 = vpop.f32.mrf.mxu0
    %v362 = vadd.f32 0.0, %v361
    %v363 = vpop.f32.mrf.mxu0
    %364 = vmatprep.mubr.f32.mxu0 0.0
    %365 = vmatmul.mubr.f32.gmra.mxu0 %v237
    %v366 = vpop.f32.mrf.mxu0
    %v367 = vadd.f32 0.0, %v366
    %v368 = vpop.f32.mrf.mxu0
    %369 = vmatprep.mubr.f32.mxu0 0.0
    %370 = vmatmul.mubr.f32.gmra.mxu0 %v240
    %v371 = vpop.f32.mrf.mxu0
    %v372 = vadd.f32 0.0, %v371
    %v373 = vpop.f32.mrf.mxu0
    %374 = vmatprep.mubr.f32.mxu0 0.0
    %375 = vmatmul.mubr.f32.gmra.mxu0 %v243
    %v376 = vpop.f32.mrf.mxu0
    %v377 = vadd.f32 0.0, %v376
    %v378 = vpop.f32.mrf.mxu0
    %379 = vmatprep.mubr.f32.mxu0 0.0
    %380 = vmatmul.mubr.f32.gmra.mxu0 %v246
    %v381 = vpop.f32.mrf.mxu0
    %v382 = vadd.f32 0.0, %v381
    %v383 = vpop.f32.mrf.mxu0
    %384 = vmatprep.mubr.f32.mxu0 0.0
    %385 = vmatmul.mubr.f32.gmra.mxu0 %v249
    %v386 = vpop.f32.mrf.mxu0
    %v387 = vadd.f32 0.0, %v386
    %v388 = vpop.f32.mrf.mxu0
    %389 = vmatprep.mubr.f32.mxu0 0.0
    %390 = vmatmul.mubr.f32.gmra.mxu0 %v252
    %v391 = vpop.f32.mrf.mxu0
    %v392 = vadd.f32 0.0, %v391
    %v393 = vpop.f32.mrf.mxu0
    %394 = vmatprep.mubr.f32.mxu0 0.0
    %395 = vmatmul.mubr.f32.gmra.mxu0 %v255
    %v396 = vpop.f32.mrf.mxu0
    %v397 = vadd.f32 0.0, %v396
    %v398 = vpop.f32.mrf.mxu0
    %399 = vmatprep.mubr.f32.mxu0 0.0
    %400 = vmatmul.mubr.f32.gmra.mxu0 %v258
    %v401 = vpop.f32.mrf.mxu0
    %v402 = vadd.f32 0.0, %v401
    %v403 = vpop.f32.mrf.mxu0
    %404 = vdwg.mxu0
    %v405 = vld [vmem:[%s174] sm:$0xff]
    %v406 = vld [vmem:[%s174 + $0x8] sm:$0xff]
    %v407 = vld [vmem:[%s174 + $0x10] sm:$0xff]
    %v408 = vld [vmem:[%s174 + $0x18] sm:$0xff]
    %v409 = vld [vmem:[%s174 + $0x20] sm:$0xff]
    %v410 = vld [vmem:[%s174 + $0x28] sm:$0xff]
    %v411 = vld [vmem:[%s174 + $0x30] sm:$0xff]
    %v412 = vld [vmem:[%s174 + $0x38] sm:$0xff]
    %v413 = vld [vmem:[%s174 + $0x40] sm:$0xff]
    %v414 = vld [vmem:[%s174 + $0x48] sm:$0xff]
    %v415 = vld [vmem:[%s174 + $0x50] sm:$0xff]
    %v416 = vld [vmem:[%s174 + $0x58] sm:$0xff]
    %v417 = vld [vmem:[%s174 + $0x60] sm:$0xff]
    %v418 = vld [vmem:[%s174 + $0x68] sm:$0xff]
    %v419 = vld [vmem:[%s174 + $0x70] sm:$0xff]
    %v420 = vld [vmem:[%s174 + $0x78] sm:$0xff]
    %v421 = vld [vmem:[%s183] sm:$0x1]
    %423 = vset.pattern.permute.xlu0 0
    %424 = vperm.xlu0 %423, %v405
    %v425 = vpop.permute.xlu0 %424
    %428 = vset.pattern.permute.xlu0 0
    %429 = vperm.xlu0 %428, %v406
    %v430 = vpop.permute.xlu0 %429
    %433 = vset.pattern.permute.xlu0 0
    %434 = vperm.xlu0 %433, %v407
    %v435 = vpop.permute.xlu0 %434
    %438 = vset.pattern.permute.xlu0 0
    %439 = vperm.xlu0 %438, %v408
    %v440 = vpop.permute.xlu0 %439
    %443 = vset.pattern.permute.xlu0 0
    %444 = vperm.xlu0 %443, %v409
    %v445 = vpop.permute.xlu0 %444
    %448 = vset.pattern.permute.xlu0 0
    %449 = vperm.xlu0 %448, %v410
    %v450 = vpop.permute.xlu0 %449
    %453 = vset.pattern.permute.xlu0 0
    %454 = vperm.xlu0 %453, %v411
    %v455 = vpop.permute.xlu0 %454
    %458 = vset.pattern.permute.xlu0 0
    %459 = vperm.xlu0 %458, %v412
    %v460 = vpop.permute.xlu0 %459
    %463 = vset.pattern.permute.xlu0 0
    %464 = vperm.xlu0 %463, %v413
    %v465 = vpop.permute.xlu0 %464
    %468 = vset.pattern.permute.xlu0 0
    %469 = vperm.xlu0 %468, %v414
    %v470 = vpop.permute.xlu0 %469
    %473 = vset.pattern.permute.xlu0 0
    %474 = vperm.xlu0 %473, %v415
    %v475 = vpop.permute.xlu0 %474
    %478 = vset.pattern.permute.xlu0 0
    %479 = vperm.xlu0 %478, %v416
    %v480 = vpop.permute.xlu0 %479
    %483 = vset.pattern.permute.xlu0 0
    %484 = vperm.xlu0 %483, %v417
    %v485 = vpop.permute.xlu0 %484
    %488 = vset.pattern.permute.xlu0 0
    %489 = vperm.xlu0 %488, %v418
    %v490 = vpop.permute.xlu0 %489
    %493 = vset.pattern.permute.xlu0 0
    %494 = vperm.xlu0 %493, %v419
    %v495 = vpop.permute.xlu0 %494
    %498 = vset.pattern.permute.xlu0 0
    %499 = vperm.xlu0 %498, %v420
    %v500 = vpop.permute.xlu0 %499
    %v503 = vlaneseq
    %v504 = vshrl.u32 %v503, 7
    %v505 = vsub.s32 0, %v504
    %v506 = vrot.slane %v421, %v505
    %v508 = vadd.f32 %v425, %v506
    %v509 = vadd.f32 %v430, %v506
    %v510 = vadd.f32 %v435, %v506
    %v511 = vadd.f32 %v440, %v506
    %v512 = vadd.f32 %v445, %v506
    %v513 = vadd.f32 %v450, %v506
    %v514 = vadd.f32 %v455, %v506
    %v515 = vadd.f32 %v460, %v506
    %v516 = vadd.f32 %v465, %v506
    %v517 = vadd.f32 %v470, %v506
    %v518 = vadd.f32 %v475, %v506
    %v519 = vadd.f32 %v480, %v506
    %v520 = vadd.f32 %v485, %v506
    %v521 = vadd.f32 %v490, %v506
    %v522 = vadd.f32 %v495, %v506
    %v523 = vadd.f32 %v500, %v506
    %v524 = vmul.f32 %v327, 2.0
    %v525 = vmul.f32 %v332, 2.0
    %v526 = vmul.f32 %v337, 2.0
    %v527 = vmul.f32 %v342, 2.0
    %v528 = vmul.f32 %v347, 2.0
    %v529 = vmul.f32 %v352, 2.0
    %v530 = vmul.f32 %v357, 2.0
    %v531 = vmul.f32 %v362, 2.0
    %v532 = vmul.f32 %v367, 2.0
    %v533 = vmul.f32 %v372, 2.0
    %v534 = vmul.f32 %v377, 2.0
    %v535 = vmul.f32 %v382, 2.0
    %v536 = vmul.f32 %v387, 2.0
    %v537 = vmul.f32 %v392, 2.0
    %v538 = vmul.f32 %v397, 2.0
    %v539 = vmul.f32 %v402, 2.0
    %v540 = vsub.f32 %v508, %v524
    %v541 = vsub.f32 %v509, %v525
    %v542 = vsub.f32 %v510, %v526
    %v543 = vsub.f32 %v511, %v527
    %v544 = vsub.f32 %v512, %v528
    %v545 = vsub.f32 %v513, %v529
    %v546 = vsub.f32 %v514, %v530
    %v547 = vsub.f32 %v515, %v531
    %v548 = vsub.f32 %v516, %v532
    %v549 = vsub.f32 %v517, %v533
    %v550 = vsub.f32 %v518, %v534
    %v551 = vsub.f32 %v519, %v535
    %v552 = vsub.f32 %v520, %v536
    %v553 = vsub.f32 %v521, %v537
    %v554 = vsub.f32 %v522, %v538
    %v555 = vsub.f32 %v523, %v539
    %v556 = vmax.f32 %v540, 0.0
    %v557 = vmax.f32 %v541, 0.0
    %v558 = vmax.f32 %v542, 0.0
    %v559 = vmax.f32 %v543, 0.0
    %v560 = vmax.f32 %v544, 0.0
    %v561 = vmax.f32 %v545, 0.0
    %v562 = vmax.f32 %v546, 0.0
    %v563 = vmax.f32 %v547, 0.0
    %v564 = vmax.f32 %v548, 0.0
    %v565 = vmax.f32 %v549, 0.0
    %v566 = vmax.f32 %v550, 0.0
    %v567 = vmax.f32 %v551, 0.0
    %v568 = vmax.f32 %v552, 0.0
    %v569 = vmax.f32 %v553, 0.0
    %v570 = vmax.f32 %v554, 0.0
    %v571 = vmax.f32 %v555, 0.0
    %v572 = vrsqrt.pop %v556
    %v573 = vmul.f32 %v556, %v572
    %vm574 = vcmp.eq.f32.partialorder %v556, inf
    %v575 = vsel %vm574, %v556, %v573
    %vm576 = vcmp.eq.f32.partialorder %v556, 0.0
    %v577 = vand.u32 %v556, 2147483648
    %v578 = vsel %vm576, %v577, %v575
    %v579 = vrsqrt.pop %v557
    %v580 = vmul.f32 %v557, %v579
    %vm581 = vcmp.eq.f32.partialorder %v557, inf
    %v582 = vsel %vm581, %v557, %v580
    %vm583 = vcmp.eq.f32.partialorder %v557, 0.0
    %v584 = vand.u32 %v557, 2147483648
    %v585 = vsel %vm583, %v584, %v582
    %v586 = vrsqrt.pop %v558
    %v587 = vmul.f32 %v558, %v586
    %vm588 = vcmp.eq.f32.partialorder %v558, inf
    %v589 = vsel %vm588, %v558, %v587
    %vm590 = vcmp.eq.f32.partialorder %v558, 0.0
    %v591 = vand.u32 %v558, 2147483648
    %v592 = vsel %vm590, %v591, %v589
    %v593 = vrsqrt.pop %v559
    %v594 = vmul.f32 %v559, %v593
    %vm595 = vcmp.eq.f32.partialorder %v559, inf
    %v596 = vsel %vm595, %v559, %v594
    %vm597 = vcmp.eq.f32.partialorder %v559, 0.0
    %v598 = vand.u32 %v559, 2147483648
    %v599 = vsel %vm597, %v598, %v596
    %v600 = vrsqrt.pop %v560
    %v601 = vmul.f32 %v560, %v600
    %vm602 = vcmp.eq.f32.partialorder %v560, inf
    %v603 = vsel %vm602, %v560, %v601
    %vm604 = vcmp.eq.f32.partialorder %v560, 0.0
    %v605 = vand.u32 %v560, 2147483648
    %v606 = vsel %vm604, %v605, %v603
    %v607 = vrsqrt.pop %v561
    %v608 = vmul.f32 %v561, %v607
    %vm609 = vcmp.eq.f32.partialorder %v561, inf
    %v610 = vsel %vm609, %v561, %v608
    %vm611 = vcmp.eq.f32.partialorder %v561, 0.0
    %v612 = vand.u32 %v561, 2147483648
    %v613 = vsel %vm611, %v612, %v610
    %v614 = vrsqrt.pop %v562
    %v615 = vmul.f32 %v562, %v614
    %vm616 = vcmp.eq.f32.partialorder %v562, inf
    %v617 = vsel %vm616, %v562, %v615
    %vm618 = vcmp.eq.f32.partialorder %v562, 0.0
    %v619 = vand.u32 %v562, 2147483648
    %v620 = vsel %vm618, %v619, %v617
    %v621 = vrsqrt.pop %v563
    %v622 = vmul.f32 %v563, %v621
    %vm623 = vcmp.eq.f32.partialorder %v563, inf
    %v624 = vsel %vm623, %v563, %v622
    %vm625 = vcmp.eq.f32.partialorder %v563, 0.0
    %v626 = vand.u32 %v563, 2147483648
    %v627 = vsel %vm625, %v626, %v624
    %v628 = vrsqrt.pop %v564
    %v629 = vmul.f32 %v564, %v628
    %vm630 = vcmp.eq.f32.partialorder %v564, inf
    %v631 = vsel %vm630, %v564, %v629
    %vm632 = vcmp.eq.f32.partialorder %v564, 0.0
    %v633 = vand.u32 %v564, 2147483648
    %v634 = vsel %vm632, %v633, %v631
    %v635 = vrsqrt.pop %v565
    %v636 = vmul.f32 %v565, %v635
    %vm637 = vcmp.eq.f32.partialorder %v565, inf
    %v638 = vsel %vm637, %v565, %v636
    %vm639 = vcmp.eq.f32.partialorder %v565, 0.0
    %v640 = vand.u32 %v565, 2147483648
    %v641 = vsel %vm639, %v640, %v638
    %v642 = vrsqrt.pop %v566
    %v643 = vmul.f32 %v566, %v642
    %vm644 = vcmp.eq.f32.partialorder %v566, inf
    %v645 = vsel %vm644, %v566, %v643
    %vm646 = vcmp.eq.f32.partialorder %v566, 0.0
    %v647 = vand.u32 %v566, 2147483648
    %v648 = vsel %vm646, %v647, %v645
    %v649 = vrsqrt.pop %v567
    %v650 = vmul.f32 %v567, %v649
    %vm651 = vcmp.eq.f32.partialorder %v567, inf
    %v652 = vsel %vm651, %v567, %v650
    %vm653 = vcmp.eq.f32.partialorder %v567, 0.0
    %v654 = vand.u32 %v567, 2147483648
    %v655 = vsel %vm653, %v654, %v652
    %v656 = vrsqrt.pop %v568
    %v657 = vmul.f32 %v568, %v656
    %vm658 = vcmp.eq.f32.partialorder %v568, inf
    %v659 = vsel %vm658, %v568, %v657
    %vm660 = vcmp.eq.f32.partialorder %v568, 0.0
    %v661 = vand.u32 %v568, 2147483648
    %v662 = vsel %vm660, %v661, %v659
    %v663 = vrsqrt.pop %v569
    %v664 = vmul.f32 %v569, %v663
    %vm665 = vcmp.eq.f32.partialorder %v569, inf
    %v666 = vsel %vm665, %v569, %v664
    %vm667 = vcmp.eq.f32.partialorder %v569, 0.0
    %v668 = vand.u32 %v569, 2147483648
    %v669 = vsel %vm667, %v668, %v666
    %v670 = vrsqrt.pop %v570
    %v671 = vmul.f32 %v570, %v670
    %vm672 = vcmp.eq.f32.partialorder %v570, inf
    %v673 = vsel %vm672, %v570, %v671
    %vm674 = vcmp.eq.f32.partialorder %v570, 0.0
    %v675 = vand.u32 %v570, 2147483648
    %v676 = vsel %vm674, %v675, %v673
    %v677 = vrsqrt.pop %v571
    %v678 = vmul.f32 %v571, %v677
    %vm679 = vcmp.eq.f32.partialorder %v571, inf
    %v680 = vsel %vm679, %v571, %v678
    %vm681 = vcmp.eq.f32.partialorder %v571, 0.0
    %v682 = vand.u32 %v571, 2147483648
    %v683 = vsel %vm681, %v682, %v680
    %v684 = vsub.f32 1.0, %v578
    %v685 = vsub.f32 1.0, %v585
    %v686 = vsub.f32 1.0, %v592
    %v687 = vsub.f32 1.0, %v599
    %v688 = vsub.f32 1.0, %v606
    %v689 = vsub.f32 1.0, %v613
    %v690 = vsub.f32 1.0, %v620
    %v691 = vsub.f32 1.0, %v627
    %v692 = vsub.f32 1.0, %v634
    %v693 = vsub.f32 1.0, %v641
    %v694 = vsub.f32 1.0, %v648
    %v695 = vsub.f32 1.0, %v655
    %v696 = vsub.f32 1.0, %v662
    %v697 = vsub.f32 1.0, %v669
    %v698 = vsub.f32 1.0, %v676
    %v699 = vsub.f32 1.0, %v683
    %v700 = vmax.f32 %v684, 0.0
    %v701 = vmax.f32 %v685, 0.0
    %v702 = vmax.f32 %v686, 0.0
    %v703 = vmax.f32 %v687, 0.0
    %v704 = vmax.f32 %v688, 0.0
    %v705 = vmax.f32 %v689, 0.0
    %v706 = vmax.f32 %v690, 0.0
    %v707 = vmax.f32 %v691, 0.0
    %v708 = vmax.f32 %v692, 0.0
    %v709 = vmax.f32 %v693, 0.0
    %v710 = vmax.f32 %v694, 0.0
    %v711 = vmax.f32 %v695, 0.0
    %v712 = vmax.f32 %v696, 0.0
    %v713 = vmax.f32 %v697, 0.0
    %v714 = vmax.f32 %v698, 0.0
    %v715 = vmax.f32 %v699, 0.0
    %v716 = vld [vmem:[%s155] sm:$0xff]
    %v717 = vld [vmem:[%s155 + $0x8] sm:$0xff]
    %v718 = vld [vmem:[%s155 + $0x10] sm:$0xff]
    %v719 = vld [vmem:[%s155 + $0x18] sm:$0xff]
    %v720 = vld [vmem:[%s155 + $0x20] sm:$0xff]
    %v721 = vld [vmem:[%s155 + $0x28] sm:$0xff]
    %v722 = vld [vmem:[%s155 + $0x30] sm:$0xff]
    %v723 = vld [vmem:[%s155 + $0x38] sm:$0xff]
    %v724 = vld [vmem:[%s155 + $0x40] sm:$0xff]
    %v725 = vld [vmem:[%s155 + $0x48] sm:$0xff]
    %v726 = vld [vmem:[%s155 + $0x50] sm:$0xff]
    %v727 = vld [vmem:[%s155 + $0x58] sm:$0xff]
    %v728 = vld [vmem:[%s155 + $0x60] sm:$0xff]
    %v729 = vld [vmem:[%s155 + $0x68] sm:$0xff]
    %v730 = vld [vmem:[%s155 + $0x70] sm:$0xff]
    %v731 = vld [vmem:[%s155 + $0x78] sm:$0xff]
    %v732 = vld [vmem:[%s164] sm:$0x1]
    %733 = vset.pattern.permute.xlu0 0
    %734 = vperm.xlu0 %733, %v716
    %v735 = vpop.permute.xlu0 %734
    %736 = vset.pattern.permute.xlu0 0
    %737 = vperm.xlu0 %736, %v717
    %v738 = vpop.permute.xlu0 %737
    %739 = vset.pattern.permute.xlu0 0
    %740 = vperm.xlu0 %739, %v718
    %v741 = vpop.permute.xlu0 %740
    %742 = vset.pattern.permute.xlu0 0
    %743 = vperm.xlu0 %742, %v719
    %v744 = vpop.permute.xlu0 %743
    %745 = vset.pattern.permute.xlu0 0
    %746 = vperm.xlu0 %745, %v720
    %v747 = vpop.permute.xlu0 %746
    %748 = vset.pattern.permute.xlu0 0
    %749 = vperm.xlu0 %748, %v721
    %v750 = vpop.permute.xlu0 %749
    %751 = vset.pattern.permute.xlu0 0
    %752 = vperm.xlu0 %751, %v722
    %v753 = vpop.permute.xlu0 %752
    %754 = vset.pattern.permute.xlu0 0
    %755 = vperm.xlu0 %754, %v723
    %v756 = vpop.permute.xlu0 %755
    %757 = vset.pattern.permute.xlu0 0
    %758 = vperm.xlu0 %757, %v724
    %v759 = vpop.permute.xlu0 %758
    %760 = vset.pattern.permute.xlu0 0
    %761 = vperm.xlu0 %760, %v725
    %v762 = vpop.permute.xlu0 %761
    %763 = vset.pattern.permute.xlu0 0
    %764 = vperm.xlu0 %763, %v726
    %v765 = vpop.permute.xlu0 %764
    %766 = vset.pattern.permute.xlu0 0
    %767 = vperm.xlu0 %766, %v727
    %v768 = vpop.permute.xlu0 %767
    %769 = vset.pattern.permute.xlu0 0
    %770 = vperm.xlu0 %769, %v728
    %v771 = vpop.permute.xlu0 %770
    %772 = vset.pattern.permute.xlu0 0
    %773 = vperm.xlu0 %772, %v729
    %v774 = vpop.permute.xlu0 %773
    %775 = vset.pattern.permute.xlu0 0
    %776 = vperm.xlu0 %775, %v730
    %v777 = vpop.permute.xlu0 %776
    %778 = vset.pattern.permute.xlu0 0
    %779 = vperm.xlu0 %778, %v731
    %v780 = vpop.permute.xlu0 %779
    %v781 = vlaneseq
    %v782 = vshrl.u32 %v781, 7
    %v783 = vsub.s32 0, %v782
    %v784 = vrot.slane %v732, %v783
    %vm785 = vcmp.eq.s32.totalorder %v735, %v784
    %vm786 = vcmp.eq.s32.totalorder %v738, %v784
    %vm787 = vcmp.eq.s32.totalorder %v741, %v784
    %vm788 = vcmp.eq.s32.totalorder %v744, %v784
    %vm789 = vcmp.eq.s32.totalorder %v747, %v784
    %vm790 = vcmp.eq.s32.totalorder %v750, %v784
    %vm791 = vcmp.eq.s32.totalorder %v753, %v784
    %vm792 = vcmp.eq.s32.totalorder %v756, %v784
    %vm793 = vcmp.eq.s32.totalorder %v759, %v784
    %vm794 = vcmp.eq.s32.totalorder %v762, %v784
    %vm795 = vcmp.eq.s32.totalorder %v765, %v784
    %vm796 = vcmp.eq.s32.totalorder %v768, %v784
    %vm797 = vcmp.eq.s32.totalorder %v771, %v784
    %vm798 = vcmp.eq.s32.totalorder %v774, %v784
    %vm799 = vcmp.eq.s32.totalorder %v777, %v784
    %vm800 = vcmp.eq.s32.totalorder %v780, %v784
    %v801 = vmul.f32 %v700, %v700
    %v802 = vmul.f32 %v701, %v701
    %v803 = vmul.f32 %v702, %v702
    %v804 = vmul.f32 %v703, %v703
    %v805 = vmul.f32 %v704, %v704
    %v806 = vmul.f32 %v705, %v705
    %v807 = vmul.f32 %v706, %v706
    %v808 = vmul.f32 %v707, %v707
    %v809 = vmul.f32 %v708, %v708
    %v810 = vmul.f32 %v709, %v709
    %v811 = vmul.f32 %v710, %v710
    %v812 = vmul.f32 %v711, %v711
    %v813 = vmul.f32 %v712, %v712
    %v814 = vmul.f32 %v713, %v713
    %v815 = vmul.f32 %v714, %v714
    %v816 = vmul.f32 %v715, %v715
    %v817 = vsel %vm785, %v556, %v801
    %v818 = vsel %vm786, %v557, %v802
    %v819 = vsel %vm787, %v558, %v803
    %v820 = vsel %vm788, %v559, %v804
    %v821 = vsel %vm789, %v560, %v805
    %v822 = vsel %vm790, %v561, %v806
    %v823 = vsel %vm791, %v562, %v807
    %v824 = vsel %vm792, %v563, %v808
    %v825 = vsel %vm793, %v564, %v809
    %v826 = vsel %vm794, %v565, %v810
    %v827 = vsel %vm795, %v566, %v811
    %v828 = vsel %vm796, %v567, %v812
    %v829 = vsel %vm797, %v568, %v813
    %v830 = vsel %vm798, %v569, %v814
    %v831 = vsel %vm799, %v570, %v815
    %v832 = vsel %vm800, %v571, %v816
    %p833 = scmp.lt.s32.totalorder %s188, %s190
    %s834 = sadd.s32 %s190, 1
    %s835 = smul.u32 %s834, 128
    %p836 = scmp.le.s32.totalorder %s835, 8
    %p837 = pnand %p833, %p836
    %p838 = pneg %p837
    // Predicated region
    $region26: #{tpu_custom_call.1} parent=1 // pred_check
      _
    $region27: #{tpu_custom_call.1} parent=1 // pred_check_branch
      %840 = sbr.rel (%p837) target = $region29
    $region28: #{tpu_custom_call.1} parent=1 // pred_region
      %v841 = vadd.f32 %v817, %v818
      %v842 = vadd.f32 %v841, %v819
      %v843 = vadd.f32 %v842, %v820
      %v844 = vadd.f32 %v843, %v821
      %v845 = vadd.f32 %v844, %v822
      %v846 = vadd.f32 %v845, %v823
      %v847 = vadd.f32 %v846, %v824
      %v848 = vadd.f32 %v847, %v825
      %v849 = vadd.f32 %v848, %v826
      %v850 = vadd.f32 %v849, %v827
      %v851 = vadd.f32 %v850, %v828
      %v852 = vadd.f32 %v851, %v829
      %v853 = vadd.f32 %v852, %v830
      %v854 = vadd.f32 %v853, %v831
      %v855 = vadd.f32 %v854, %v832
      %856 = vadd.xlane.f32.xlu0 %v855
      %v857 = vpop.xlane.xlu0 %856
      %v858 = vrot.slane %v857, 4
      %v859 = vadd.f32 %v857, %v858
      %v860 = vrot.slane %v859, 2
      %v861 = vadd.f32 %v859, %v860
      %v862 = vrot.slane %v861, 1
      %v863 = vadd.f32 %v861, %v862
      %s864 = vtos %v863
      %v865 = vstv %s864
      %866 = vst [vmem:[#allocation4] sm:$0xff] %v865
    $region29: #{tpu_custom_call.1} parent=1 // pred_fallthru
      _
    %p867 = pneg %p838
    // Predicated region
    $region30: #{tpu_custom_call.1} parent=1 // pred_check
      _
    $region31: #{tpu_custom_call.1} parent=1 // pred_check_branch
      %869 = sbr.rel (%p838) target = $region33
    $region32: #{tpu_custom_call.1} parent=1 // pred_region
      %s870 = smul.u32 %s188, 128
      %v871 = vlaneseq
      %v872 = vshrl.u32 %v871, 7
      %v873 = vadd.s32 %v872, 8
      %v874 = vadd.s32 %v872, 16
      %v875 = vadd.s32 %v872, 24
      %v876 = vadd.s32 %v872, 32
      %v877 = vadd.s32 %v872, 40
      %v878 = vadd.s32 %v872, 48
      %v879 = vadd.s32 %v872, 56
      %v880 = vadd.s32 %v872, 64
      %v881 = vadd.s32 %v872, 72
      %v882 = vadd.s32 %v872, 80
      %v883 = vadd.s32 %v872, 88
      %v884 = vadd.s32 %v872, 96
      %v885 = vadd.s32 %v872, 104
      %v886 = vadd.s32 %v872, 112
      %v887 = vadd.s32 %v872, 120
      %v888 = vstv %s870
      %v889 = vadd.s32 %v888, %v872
      %v890 = vadd.s32 %v888, %v873
      %v891 = vadd.s32 %v888, %v874
      %v892 = vadd.s32 %v888, %v875
      %v893 = vadd.s32 %v888, %v876
      %v894 = vadd.s32 %v888, %v877
      %v895 = vadd.s32 %v888, %v878
      %v896 = vadd.s32 %v888, %v879
      %v897 = vadd.s32 %v888, %v880
      %v898 = vadd.s32 %v888, %v881
      %v899 = vadd.s32 %v888, %v882
      %v900 = vadd.s32 %v888, %v883
      %v901 = vadd.s32 %v888, %v884
      %v902 = vadd.s32 %v888, %v885
      %v903 = vadd.s32 %v888, %v886
      %v904 = vadd.s32 %v888, %v887
      %s905 = smul.u32 %s190, 128
      %v906 = vlaneseq
      %v907 = vand.u32 %v906, 127
      %v908 = vstv %s905
      %v909 = vadd.s32 %v908, %v907
      %vm910 = vcmp.lt.s32.totalorder %v889, %v909
      %vm911 = vcmp.lt.s32.totalorder %v890, %v909
      %vm912 = vcmp.lt.s32.totalorder %v891, %v909
      %vm913 = vcmp.lt.s32.totalorder %v892, %v909
      %vm914 = vcmp.lt.s32.totalorder %v893, %v909
      %vm915 = vcmp.lt.s32.totalorder %v894, %v909
      %vm916 = vcmp.lt.s32.totalorder %v895, %v909
      %vm917 = vcmp.lt.s32.totalorder %v896, %v909
      %vm918 = vcmp.lt.s32.totalorder %v897, %v909
      %vm919 = vcmp.lt.s32.totalorder %v898, %v909
      %vm920 = vcmp.lt.s32.totalorder %v899, %v909
      %vm921 = vcmp.lt.s32.totalorder %v900, %v909
      %vm922 = vcmp.lt.s32.totalorder %v901, %v909
      %vm923 = vcmp.lt.s32.totalorder %v902, %v909
      %vm924 = vcmp.lt.s32.totalorder %v903, %v909
      %vm925 = vcmp.lt.s32.totalorder %v904, %v909
      %vm926 = vcmp.lt.s32.totalorder %v909, 8
      %vm927 = vmand %vm910, %vm926
      %vm928 = vmand %vm911, %vm926
      %vm929 = vmand %vm912, %vm926
      %vm930 = vmand %vm913, %vm926
      %vm931 = vmand %vm914, %vm926
      %vm932 = vmand %vm915, %vm926
      %vm933 = vmand %vm916, %vm926
      %vm934 = vmand %vm917, %vm926
      %vm935 = vmand %vm918, %vm926
      %vm936 = vmand %vm919, %vm926
      %vm937 = vmand %vm920, %vm926
      %vm938 = vmand %vm921, %vm926
      %vm939 = vmand %vm922, %vm926
      %vm940 = vmand %vm923, %vm926
      %vm941 = vmand %vm924, %vm926
      %vm942 = vmand %vm925, %vm926
      %v943 = vsel %vm927, %v817, 0.0
      %v944 = vsel %vm928, %v818, 0.0
      %v945 = vsel %vm929, %v819, 0.0
      %v946 = vsel %vm930, %v820, 0.0
      %v947 = vsel %vm931, %v821, 0.0
      %v948 = vsel %vm932, %v822, 0.0
      %v949 = vsel %vm933, %v823, 0.0
      %v950 = vsel %vm934, %v824, 0.0
      %v951 = vsel %vm935, %v825, 0.0
      %v952 = vsel %vm936, %v826, 0.0
      %v953 = vsel %vm937, %v827, 0.0
      %v954 = vsel %vm938, %v828, 0.0
      %v955 = vsel %vm939, %v829, 0.0
      %v956 = vsel %vm940, %v830, 0.0
      %v957 = vsel %vm941, %v831, 0.0
      %v958 = vsel %vm942, %v832, 0.0
      %v959 = vadd.f32 %v943, %v944
      %v960 = vadd.f32 %v959, %v945
      %v961 = vadd.f32 %v960, %v946
      %v962 = vadd.f32 %v961, %v947
      %v963 = vadd.f32 %v962, %v948
      %v964 = vadd.f32 %v963, %v949
      %v965 = vadd.f32 %v964, %v950
      %v966 = vadd.f32 %v965, %v951
      %v967 = vadd.f32 %v966, %v952
      %v968 = vadd.f32 %v967, %v953
      %v969 = vadd.f32 %v968, %v954
      %v970 = vadd.f32 %v969, %v955
      %v971 = vadd.f32 %v970, %v956
      %v972 = vadd.f32 %v971, %v957
      %v973 = vadd.f32 %v972, %v958
      %974 = vadd.xlane.f32.xlu0 %v973
      %v975 = vpop.xlane.xlu0 %974
      %v976 = vrot.slane %v975, 4
      %v977 = vadd.f32 %v975, %v976
      %v978 = vrot.slane %v977, 2
      %v979 = vadd.f32 %v977, %v978
      %v980 = vrot.slane %v979, 1
      %v981 = vadd.f32 %v979, %v980
      %s982 = vtos %v981
      %v983 = vstv %s982
      %984 = vst [vmem:[#allocation4] sm:$0xff] %v983
    $region33: #{tpu_custom_call.1} parent=1 // pred_fallthru
      _
    // Predicated region
    $region34: #{tpu_custom_call.1} parent=1 // pred_check
      _
    $region35: #{tpu_custom_call.1} parent=1 // pred_check_branch
      %986 = sbr.rel (0) target = $region37
    $region36: #{tpu_custom_call.1} parent=1 // pred_region
      %s988 = ssub.s32 128, 128
      %989 = vsyncadd [#allocation5], %s988
      %s991 = sshll.u32 [#allocation4], 4
      %s992 = int_to_ptr.vmem [resolvable:$true] %s991
      %994 = dma.vmem_to_hbm [thread:$0]  %s992, 128, %s7, [#allocation5]
    $region37: #{tpu_custom_call.1} parent=1 // pred_fallthru
      _
    // Predicated region
    $region38: #{tpu_custom_call.1} parent=1 // pred_check
      _
    $region39: #{tpu_custom_call.1} parent=1 // pred_check_branch
      %996 = sbr.rel (0) target = $region41
    $region40: #{tpu_custom_call.1} parent=1 // pred_region
      %997 = dma.done [#allocation5], 128
    $region41: #{tpu_custom_call.1} parent=1 // pred_fallthru
      _
    %998 = vsyncpa [#allocation5], 1

</llo_original>
